<compile_context>
chip_gen: v7x
topology: tpu7x:2x2x1
jax: 0.10.0
libtpu: 0.0.40
codegen_flags: <defaults>
</compile_context>

<pallas_src>
import jax
import jax.numpy as jnp
from jax.experimental import pallas as pl
from jax.experimental.pallas import tpu as pltpu

# ----------------------------- model dimensions -----------------------------
BATCH = 16            # rows of features fed to the adapter
C_IN = 512            # CLIP feature dim (c_in)
REDUCTION = 4
HID = C_IN // REDUCTION   # 128 — lane-aligned bottleneck width
LARGE_TILE = 256          # row tile used only when the batch is big & aligned


# ------------------------------ Pallas kernel -------------------------------
def _adapter_kernel(x_ref, w1_ref, w2_ref, o_ref):
    # x_ref:  (tile, C_IN)   w1_ref: (C_IN, HID)   w2_ref: (HID, C_IN)
    x = x_ref[...]
    h = jnp.maximum(
        jnp.dot(x, w1_ref[...], preferred_element_type=jnp.float32), 0.0)
    y = jnp.maximum(
        jnp.dot(h, w2_ref[...], preferred_element_type=jnp.float32), 0.0)
    o_ref[...] = y.astype(o_ref.dtype)


def adapter_forward(params, x):
    """Adapter.forward: ReLU(ReLU(x @ W1) @ W2).  x: (B, C_IN) -> (B, C_IN).

    `params["w1"]`/`params["w2"]` are stored already transposed relative to the
    PyTorch (out_features, in_features) layout, so no transpose runs per call.
    """
    B, D = x.shape
    w1 = params["w1"]                  # (C_IN, HID)
    w2 = params["w2"]                  # (HID, C_IN)
    hid = w1.shape[1]
    assert D == w1.shape[0] and w2.shape == (hid, D), (w1.shape, w2.shape, D)

    # Small batch (or unaligned): one grid step, whole batch as a single block.
    # Large aligned batch: 256-row tiles, sharded across TensorCores on v7x.
    if B > LARGE_TILE and B % LARGE_TILE == 0:
        tile, grid, dims = LARGE_TILE, (B // LARGE_TILE,), ("parallel",)
    else:
        tile, grid, dims = B, (1,), ("arbitrary",)

    cost = pl.CostEstimate(
        flops=4 * B * D * hid,                        # two matmuls
        transcendentals=0,
        bytes_accessed=(2 * B * D + 2 * D * hid) * 4  # x in, out, both weights
    )

    return pl.pallas_call(
        _adapter_kernel,
        grid=grid,
        in_specs=[
            pl.BlockSpec((tile, D), lambda i: (i, 0)),
            pl.BlockSpec((D, hid), lambda i: (0, 0)),
            pl.BlockSpec((hid, D), lambda i: (0, 0)),
        ],
        out_specs=pl.BlockSpec((tile, D), lambda i: (i, 0)),
        out_shape=jax.ShapeDtypeStruct((B, D), x.dtype),
        compiler_params=pltpu.CompilerParams(dimension_semantics=dims),
        cost_estimate=cost,
    )(x, w1, w2)


# ------------------------------- init params --------------------------------
def init_params(key):
    k1, k2 = jax.random.split(key)
    s1 = 1.0 / jnp.sqrt(C_IN)
    s2 = 1.0 / jnp.sqrt(HID)
    # Stored pre-transposed: w1 = fc1.weight.T (C_IN, HID), w2 = fc2.weight.T.
    return {
        "w1": s1 * jax.random.normal(k1, (C_IN, HID), jnp.float32),
        "w2": s2 * jax.random.normal(k2, (HID, C_IN), jnp.float32),
    }
    # TODO(synk): the Adapter constructor also allows bias=True; the CLIP-Adapter
    # default (bias=False) is implemented here.


if __name__ == "__main__":
    key = jax.random.PRNGKey(0)
    pkey, xkey = jax.random.split(key)
    params = init_params(pkey)
    x = jax.random.normal(xkey, (BATCH, C_IN), jnp.float32)

    fwd = jax.jit(adapter_forward)
    out = jax.block_until_ready(fwd(params, x))

    # Correctness check against plain-JAX reference of the PyTorch forward.
    ref = jnp.maximum(jnp.maximum(x @ params["w1"], 0.0) @ params["w2"], 0.0)
    assert out.shape == (BATCH, C_IN), out.shape
    assert bool(jnp.all(jnp.isfinite(out)))
    assert bool(jnp.allclose(out, ref, atol=1e-4, rtol=1e-4))
    print("KERNEL_OK")
</pallas_src>

<mosaic_0001>
module attributes {stable_mosaic.version = 11 : i64} {
  func.func @_adapter_kernel(%arg0: i32, %arg1: memref<16x512xf32, #tpu.memory_space<vmem>>, %arg2: memref<512x128xf32, #tpu.memory_space<vmem>>, %arg3: memref<128x512xf32, #tpu.memory_space<vmem>>, %arg4: memref<16x512xf32, #tpu.memory_space<vmem>>) attributes {dimension_semantics = [#tpu.dimension_semantics<arbitrary>], iteration_bounds = array<i64: 1>, scalar_prefetch = 0 : i64, scratch_operands = 0 : i64, tpu.core_type = #tpu.core_type<tc>, window_params = [{transform_indices = @transform_0, window_bounds = array<i64: 16, 512>}, {pipeline_mode = #tpu.pipeline_mode<synchronous>, transform_indices = @transform_1, window_bounds = array<i64: 512, 128>}, {pipeline_mode = #tpu.pipeline_mode<synchronous>, transform_indices = @transform_2, window_bounds = array<i64: 128, 512>}, {transform_indices = @transform_3, window_bounds = array<i64: 16, 512>}]} {
    %c0 = arith.constant 0 : index
    %c0_0 = arith.constant 0 : index
    %0 = vector.load %arg1[%c0, %c0_0] : memref<16x512xf32, #tpu.memory_space<vmem>>, vector<16x512xf32>
    %c0_1 = arith.constant 0 : index
    %c0_2 = arith.constant 0 : index
    %1 = vector.load %arg2[%c0_1, %c0_2] : memref<512x128xf32, #tpu.memory_space<vmem>>, vector<512x128xf32>
    %cst = arith.constant dense<0.000000e+00> : vector<16x128xf32>
    %2 = tpu.matmul %0, %1, %cst {dimension_numbers = #tpu.dot_dimension_numbers<[1], [0], [0], [1], [0, 0, 1, 1], [], []>} : vector<16x512xf32>, vector<512x128xf32>, vector<16x128xf32> -> vector<16x128xf32>
    %cst_3 = arith.constant 0.000000e+00 : f32
    %3 = vector.broadcast %cst_3 : f32 to vector<16x128xf32>
    %4 = arith.maximumf %2, %3 : vector<16x128xf32>
    %c0_4 = arith.constant 0 : index
    %c0_5 = arith.constant 0 : index
    %5 = vector.load %arg3[%c0_4, %c0_5] : memref<128x512xf32, #tpu.memory_space<vmem>>, vector<128x512xf32>
    %cst_6 = arith.constant dense<0.000000e+00> : vector<16x512xf32>
    %6 = tpu.matmul %4, %5, %cst_6 {dimension_numbers = #tpu.dot_dimension_numbers<[1], [0], [0], [1], [0, 0, 1, 1], [], []>} : vector<16x128xf32>, vector<128x512xf32>, vector<16x512xf32> -> vector<16x512xf32>
    %cst_7 = arith.constant 0.000000e+00 : f32
    %7 = vector.broadcast %cst_7 : f32 to vector<16x512xf32>
    %8 = arith.maximumf %6, %7 : vector<16x512xf32>
    %c0_8 = arith.constant 0 : index
    %c0_9 = arith.constant 0 : index
    %9 = vector.load %arg4[%c0_8, %c0_9] : memref<16x512xf32, #tpu.memory_space<vmem>>, vector<16x512xf32>
    tpu.vector_store %arg4[%c0_8, %c0_9], %8 {strides = array<i32>} : memref<16x512xf32, #tpu.memory_space<vmem>>, vector<16x512xf32>,
    return
  }
  func.func @transform_0(%arg0: i32) -> (i32, i32) {
    %c0_i32 = arith.constant 0 : i32
    %c0_i32_0 = arith.constant 0 : i32
    return %arg0, %c0_i32 : i32, i32
  }
  func.func @transform_1(%arg0: i32) -> (i32, i32) {
    %c0_i32 = arith.constant 0 : i32
    %c0_i32_0 = arith.constant 0 : i32
    %c0_i32_1 = arith.constant 0 : i32
    return %c0_i32, %c0_i32_0 : i32, i32
  }
  func.func @transform_2(%arg0: i32) -> (i32, i32) {
    %c0_i32 = arith.constant 0 : i32
    %c0_i32_0 = arith.constant 0 : i32
    %c0_i32_1 = arith.constant 0 : i32
    return %c0_i32, %c0_i32_0 : i32, i32
  }
  func.func @transform_3(%arg0: i32) -> (i32, i32) {
    %c0_i32 = arith.constant 0 : i32
    %c0_i32_0 = arith.constant 0 : i32
    return %arg0, %c0_i32 : i32, i32
  }
}

</mosaic_0001>

<llo_original>
// kernel: adapter_forward.1
$region0: #{adapter_forward.1}
  #allocation0 [shape = 'u32[]', space=smem, size = 0x4, offset = 0x4, fixed_abs, tag = 'smem constant byte address 0x4 - core index']
  #allocation1 [shape = 'u32[144,128]{1,0:T(1,128)}', space=vmem, size = 0x12000, scoped, tag = 'internal scratch']
  %s0 = inlined_call_operand.hbm [shape: f32[16,512], index: 0, kind: input, shape index: {}]
  %s1 = inlined_call_operand.hbm [shape: f32[512,128], index: 1, kind: input, shape index: {}]
  %s2 = inlined_call_operand.hbm [shape: f32[128,512], index: 2, kind: input, shape index: {}]
  %s3 = inlined_call_operand.hbm [shape: f32[16,512], index: 3, kind: output, shape index: {}]
  %s4 = sld [smem:[#allocation0]]
  $region34: #{adapter_forward.1} parent=0
    _
  %s6 = ssub.s32 1, %s4
  %s7 = scalar_select 0, %s6, %s4
  $region1: #{adapter_forward.1} parent=0
    #allocation2 [shape = 'u8[32768]{0}', space=vmem, size = 0x8000, scoped, tag = 'input window, operand 0, single buffered']
    #allocation3 [shape = 's32[1]{0}', space=sflag, size = 0x4, scoped, tag = 'scoped memory for adapter_forward.1']
    #allocation4 [shape = 's32[1]{0}', space=sflag, size = 0x4, scoped, tag = 'scoped memory for adapter_forward.1']
    #allocation5 [shape = 'u8[262144]{0}', space=vmem, size = 0x40000, scoped, tag = 'input window, operand 1, single buffered']
    #allocation6 [shape = 's32[1]{0}', space=sflag, size = 0x4, scoped, tag = 'scoped memory for adapter_forward.1']
    #allocation7 [shape = 'u8[262144]{0}', space=vmem, size = 0x40000, scoped, tag = 'input window, operand 2, single buffered']
    #allocation8 [shape = 'u8[32768]{0}', space=vmem, size = 0x8000, scoped, tag = 'output window, operand 0, single buffered']
    %8 = vsyncpa [#allocation3], 0
    %9 = vsyncpa [#allocation6], 0
    %10 = vsyncpa [#allocation4], 0
    // Predicated region
    $region2: #{adapter_forward.1} parent=1 // pred_check
      _
    $region3: #{adapter_forward.1} parent=1 // pred_check_branch
      %12 = sbr.rel (0) target = $region5
    $region4: #{adapter_forward.1} parent=1 // pred_region
      %s14 = ssub.s32 1024, 1024
      %15 = vsyncadd [#allocation3], %s14
      %s16 = sshll.u32 [#allocation2], 4
      %s17 = int_to_ptr.vmem [resolvable:$true] %s16
      %22 = dma.hbm_to_vmem [thread:$0]  %s0, 1024, %s17, [#allocation3], 512, 512, 32
    $region5: #{adapter_forward.1} parent=1 // pred_fallthru
      _
    // Predicated region
    $region6: #{adapter_forward.1} parent=1 // pred_check
      _
    $region7: #{adapter_forward.1} parent=1 // pred_check_branch
      %24 = sbr.rel (0) target = $region9
    $region8: #{adapter_forward.1} parent=1 // pred_region
      %s26 = ssub.s32 8192, 8192
      %27 = vsyncadd [#allocation6], %s26
      %s28 = sshll.u32 [#allocation5], 4
      %s29 = int_to_ptr.vmem [resolvable:$true] %s28
      %34 = dma.hbm_to_vmem [thread:$0]  %s1, 8192, %s29, [#allocation6], 128, 128, 8
    $region9: #{adapter_forward.1} parent=1 // pred_fallthru
      _
    // Predicated region
    $region10: #{adapter_forward.1} parent=1 // pred_check
      _
    $region11: #{adapter_forward.1} parent=1 // pred_check_branch
      %36 = sbr.rel (0) target = $region13
    $region12: #{adapter_forward.1} parent=1 // pred_region
      %s38 = ssub.s32 8192, 8192
      %39 = vsyncadd [#allocation6], %s38
      %s40 = sshll.u32 [#allocation7], 4
      %s41 = int_to_ptr.vmem [resolvable:$true] %s40
      %46 = dma.hbm_to_vmem [thread:$0]  %s2, 8192, %s41, [#allocation6], 512, 512, 32
    $region13: #{adapter_forward.1} parent=1 // pred_fallthru
      _
    // Predicated region
    $region14: #{adapter_forward.1} parent=1 // pred_check
      _
    $region15: #{adapter_forward.1} parent=1 // pred_check_branch
      %48 = sbr.rel (0) target = $region17
    $region16: #{adapter_forward.1} parent=1 // pred_region
      %49 = dma.done [#allocation3], 1024
    $region17: #{adapter_forward.1} parent=1 // pred_fallthru
      _
    // Predicated region
    $region18: #{adapter_forward.1} parent=1 // pred_check
      _
    $region19: #{adapter_forward.1} parent=1 // pred_check_branch
      %51 = sbr.rel (0) target = $region21
    $region20: #{adapter_forward.1} parent=1 // pred_region
      %52 = dma.done [#allocation6], 8192
    $region21: #{adapter_forward.1} parent=1 // pred_fallthru
      _
    // Predicated region
    $region22: #{adapter_forward.1} parent=1 // pred_check
      _
    $region23: #{adapter_forward.1} parent=1 // pred_check_branch
      %54 = sbr.rel (0) target = $region25
    $region24: #{adapter_forward.1} parent=1 // pred_region
      %55 = dma.done [#allocation6], 8192
    $region25: #{adapter_forward.1} parent=1 // pred_fallthru
      _
    %v56 = vld [vmem:[#allocation2] sm:$0xff]
    %v57 = vld [vmem:[#allocation2 + $0x8] sm:$0xff]
    %v58 = vld [vmem:[#allocation2 + $0x10] sm:$0xff]
    %v59 = vld [vmem:[#allocation2 + $0x18] sm:$0xff]
    %v60 = vld [vmem:[#allocation2 + $0x20] sm:$0xff]
    %v61 = vld [vmem:[#allocation2 + $0x28] sm:$0xff]
    %v62 = vld [vmem:[#allocation2 + $0x30] sm:$0xff]
    %v63 = vld [vmem:[#allocation2 + $0x38] sm:$0xff]
    %v64 = vld [vmem:[#allocation5] sm:$0xff]
    %v65 = vld [vmem:[#allocation5 + $0x8] sm:$0xff]
    %v66 = vld [vmem:[#allocation5 + $0x10] sm:$0xff]
    %v67 = vld [vmem:[#allocation5 + $0x18] sm:$0xff]
    %v68 = vld [vmem:[#allocation5 + $0x20] sm:$0xff]
    %v69 = vld [vmem:[#allocation5 + $0x28] sm:$0xff]
    %v70 = vld [vmem:[#allocation5 + $0x30] sm:$0xff]
    %v71 = vld [vmem:[#allocation5 + $0x38] sm:$0xff]
    %v72 = vld [vmem:[#allocation5 + $0x40] sm:$0xff]
    %v73 = vld [vmem:[#allocation5 + $0x48] sm:$0xff]
    %v74 = vld [vmem:[#allocation5 + $0x50] sm:$0xff]
    %v75 = vld [vmem:[#allocation5 + $0x58] sm:$0xff]
    %v76 = vld [vmem:[#allocation5 + $0x60] sm:$0xff]
    %v77 = vld [vmem:[#allocation5 + $0x68] sm:$0xff]
    %v78 = vld [vmem:[#allocation5 + $0x70] sm:$0xff]
    %v79 = vld [vmem:[#allocation5 + $0x78] sm:$0xff]
    %v80 = vld [vmem:[#allocation5 + $0x80] sm:$0xff]
    %v81 = vld [vmem:[#allocation5 + $0x88] sm:$0xff]
    %v82 = vld [vmem:[#allocation5 + $0x90] sm:$0xff]
    %v83 = vld [vmem:[#allocation5 + $0x98] sm:$0xff]
    %v84 = vld [vmem:[#allocation5 + $0xa0] sm:$0xff]
    %v85 = vld [vmem:[#allocation5 + $0xa8] sm:$0xff]
    %v86 = vld [vmem:[#allocation5 + $0xb0] sm:$0xff]
    %v87 = vld [vmem:[#allocation5 + $0xb8] sm:$0xff]
    %v88 = vld [vmem:[#allocation5 + $0xc0] sm:$0xff]
    %v89 = vld [vmem:[#allocation5 + $0xc8] sm:$0xff]
    %v90 = vld [vmem:[#allocation5 + $0xd0] sm:$0xff]
    %v91 = vld [vmem:[#allocation5 + $0xd8] sm:$0xff]
    %v92 = vld [vmem:[#allocation5 + $0xe0] sm:$0xff]
    %v93 = vld [vmem:[#allocation5 + $0xe8] sm:$0xff]
    %v94 = vld [vmem:[#allocation5 + $0xf0] sm:$0xff]
    %v95 = vld [vmem:[#allocation5 + $0xf8] sm:$0xff]
    %v96 = vld [vmem:[#allocation5 + $0x100] sm:$0xff]
    %v97 = vld [vmem:[#allocation5 + $0x108] sm:$0xff]
    %v98 = vld [vmem:[#allocation5 + $0x110] sm:$0xff]
    %v99 = vld [vmem:[#allocation5 + $0x118] sm:$0xff]
    %v100 = vld [vmem:[#allocation5 + $0x120] sm:$0xff]
    %v101 = vld [vmem:[#allocation5 + $0x128] sm:$0xff]
    %v102 = vld [vmem:[#allocation5 + $0x130] sm:$0xff]
    %v103 = vld [vmem:[#allocation5 + $0x138] sm:$0xff]
    %v104 = vld [vmem:[#allocation5 + $0x140] sm:$0xff]
    %v105 = vld [vmem:[#allocation5 + $0x148] sm:$0xff]
    %v106 = vld [vmem:[#allocation5 + $0x150] sm:$0xff]
    %v107 = vld [vmem:[#allocation5 + $0x158] sm:$0xff]
    %v108 = vld [vmem:[#allocation5 + $0x160] sm:$0xff]
    %v109 = vld [vmem:[#allocation5 + $0x168] sm:$0xff]
    %v110 = vld [vmem:[#allocation5 + $0x170] sm:$0xff]
    %v111 = vld [vmem:[#allocation5 + $0x178] sm:$0xff]
    %v112 = vld [vmem:[#allocation5 + $0x180] sm:$0xff]
    %v113 = vld [vmem:[#allocation5 + $0x188] sm:$0xff]
    %v114 = vld [vmem:[#allocation5 + $0x190] sm:$0xff]
    %v115 = vld [vmem:[#allocation5 + $0x198] sm:$0xff]
    %v116 = vld [vmem:[#allocation5 + $0x1a0] sm:$0xff]
    %v117 = vld [vmem:[#allocation5 + $0x1a8] sm:$0xff]
    %v118 = vld [vmem:[#allocation5 + $0x1b0] sm:$0xff]
    %v119 = vld [vmem:[#allocation5 + $0x1b8] sm:$0xff]
    %v120 = vld [vmem:[#allocation5 + $0x1c0] sm:$0xff]
    %v121 = vld [vmem:[#allocation5 + $0x1c8] sm:$0xff]
    %v122 = vld [vmem:[#allocation5 + $0x1d0] sm:$0xff]
    %v123 = vld [vmem:[#allocation5 + $0x1d8] sm:$0xff]
    %v124 = vld [vmem:[#allocation5 + $0x1e0] sm:$0xff]
    %v125 = vld [vmem:[#allocation5 + $0x1e8] sm:$0xff]
    %v126 = vld [vmem:[#allocation5 + $0x1f0] sm:$0xff]
    %v127 = vld [vmem:[#allocation5 + $0x1f8] sm:$0xff]
    %128 = vmatprep.subr.mxu0 0.0
    %129 = vmatpush1.msra.mxu0 %v64
    %130 = vmatprep.subr.mxu0 0.0
    %131 = vmatpush1.msra.mxu0 %v65
    %132 = vmatprep.subr.mxu0 0.0
    %133 = vmatpush1.msra.mxu0 %v66
    %134 = vmatprep.subr.mxu0 0.0
    %135 = vmatpush1.msra.mxu0 %v67
    %136 = vmatprep.subr.mxu0 0.0
    %137 = vmatpush1.msra.mxu0 %v68
    %138 = vmatprep.subr.mxu0 0.0
    %139 = vmatpush1.msra.mxu0 %v69
    %140 = vmatprep.subr.mxu0 0.0
    %141 = vmatpush1.msra.mxu0 %v70
    %142 = vmatprep.subr.mxu0 0.0
    %143 = vmatpush1.msra.mxu0 %v71
    %144 = vmatprep.subr.mxu0 0.0
    %145 = vmatpush1.msra.mxu0 %v72
    %146 = vmatprep.subr.mxu0 0.0
    %147 = vmatpush1.msra.mxu0 %v73
    %148 = vmatprep.subr.mxu0 0.0
    %149 = vmatpush1.msra.mxu0 %v74
    %150 = vmatprep.subr.mxu0 0.0
    %151 = vmatpush1.msra.mxu0 %v75
    %152 = vmatprep.subr.mxu0 0.0
    %153 = vmatpush1.msra.mxu0 %v76
    %154 = vmatprep.subr.mxu0 0.0
    %155 = vmatpush1.msra.mxu0 %v77
    %156 = vmatprep.subr.mxu0 0.0
    %157 = vmatpush1.msra.mxu0 %v78
    %158 = vmatprep.subr.mxu0 0.0
    %159 = vmatpush1.msra.mxu0 %v79
    %160 = vmatprep.subr.mxu0 0.0
    %161 = vmatpush1.msra.mxu0 %v80
    %162 = vmatprep.subr.mxu0 0.0
    %163 = vmatpush1.msra.mxu0 %v81
    %164 = vmatprep.subr.mxu0 0.0
    %165 = vmatpush1.msra.mxu0 %v82
    %166 = vmatprep.subr.mxu0 0.0
    %167 = vmatpush1.msra.mxu0 %v83
    %168 = vmatprep.subr.mxu0 0.0
    %169 = vmatpush1.msra.mxu0 %v84
    %170 = vmatprep.subr.mxu0 0.0
    %171 = vmatpush1.msra.mxu0 %v85
    %172 = vmatprep.subr.mxu0 0.0
    %173 = vmatpush1.msra.mxu0 %v86
    %174 = vmatprep.subr.mxu0 0.0
    %175 = vmatpush1.msra.mxu0 %v87
    %176 = vmatprep.subr.mxu0 0.0
    %177 = vmatpush1.msra.mxu0 %v88
    %178 = vmatprep.subr.mxu0 0.0
    %179 = vmatpush1.msra.mxu0 %v89
    %180 = vmatprep.subr.mxu0 0.0
    %181 = vmatpush1.msra.mxu0 %v90
    %182 = vmatprep.subr.mxu0 0.0
    %183 = vmatpush1.msra.mxu0 %v91
    %184 = vmatprep.subr.mxu0 0.0
    %185 = vmatpush1.msra.mxu0 %v92
    %186 = vmatprep.subr.mxu0 0.0
    %187 = vmatpush1.msra.mxu0 %v93
    %188 = vmatprep.subr.mxu0 0.0
    %189 = vmatpush1.msra.mxu0 %v94
    %190 = vmatprep.subr.mxu0 0.0
    %191 = vmatpush1.msra.mxu0 %v95
    %192 = vmatprep.mubr.f32.mxu0 %v57
    %193 = vmatmul.mubr.f32.gmra.mrb[0].mxu0 %v56
    %v194 = vpop.f32.mrb[0].mxu0
    %v195 = vadd.f32 0.0, %v194
    %v196 = vpop.f32.mrb[0].mxu0
    %197 = vmatprep.mubr.f32.mxu0 %v61
    %198 = vmatmul.mubr.f32.gmra.mrb[0].mxu0 %v60
    %v199 = vpop.f32.mrb[0].mxu0
    %v200 = vadd.f32 0.0, %v199
    %v201 = vpop.f32.mrb[0].mxu0
    %202 = vdwg.mxu0
    %203 = vmatprep.subr.mxu0 0.0
    %204 = vmatpush1.msra.mxu0 %v96
    %205 = vmatprep.subr.mxu0 0.0
    %206 = vmatpush1.msra.mxu0 %v97
    %207 = vmatprep.subr.mxu0 0.0
    %208 = vmatpush1.msra.mxu0 %v98
    %209 = vmatprep.subr.mxu0 0.0
    %210 = vmatpush1.msra.mxu0 %v99
    %211 = vmatprep.subr.mxu0 0.0
    %212 = vmatpush1.msra.mxu0 %v100
    %213 = vmatprep.subr.mxu0 0.0
    %214 = vmatpush1.msra.mxu0 %v101
    %215 = vmatprep.subr.mxu0 0.0
    %216 = vmatpush1.msra.mxu0 %v102
    %217 = vmatprep.subr.mxu0 0.0
    %218 = vmatpush1.msra.mxu0 %v103
    %219 = vmatprep.subr.mxu0 0.0
    %220 = vmatpush1.msra.mxu0 %v104
    %221 = vmatprep.subr.mxu0 0.0
    %222 = vmatpush1.msra.mxu0 %v105
    %223 = vmatprep.subr.mxu0 0.0
    %224 = vmatpush1.msra.mxu0 %v106
    %225 = vmatprep.subr.mxu0 0.0
    %226 = vmatpush1.msra.mxu0 %v107
    %227 = vmatprep.subr.mxu0 0.0
    %228 = vmatpush1.msra.mxu0 %v108
    %229 = vmatprep.subr.mxu0 0.0
    %230 = vmatpush1.msra.mxu0 %v109
    %231 = vmatprep.subr.mxu0 0.0
    %232 = vmatpush1.msra.mxu0 %v110
    %233 = vmatprep.subr.mxu0 0.0
    %234 = vmatpush1.msra.mxu0 %v111
    %235 = vmatprep.subr.mxu0 0.0
    %236 = vmatpush1.msra.mxu0 %v112
    %237 = vmatprep.subr.mxu0 0.0
    %238 = vmatpush1.msra.mxu0 %v113
    %239 = vmatprep.subr.mxu0 0.0
    %240 = vmatpush1.msra.mxu0 %v114
    %241 = vmatprep.subr.mxu0 0.0
    %242 = vmatpush1.msra.mxu0 %v115
    %243 = vmatprep.subr.mxu0 0.0
    %244 = vmatpush1.msra.mxu0 %v116
    %245 = vmatprep.subr.mxu0 0.0
    %246 = vmatpush1.msra.mxu0 %v117
    %247 = vmatprep.subr.mxu0 0.0
    %248 = vmatpush1.msra.mxu0 %v118
    %249 = vmatprep.subr.mxu0 0.0
    %250 = vmatpush1.msra.mxu0 %v119
    %251 = vmatprep.subr.mxu0 0.0
    %252 = vmatpush1.msra.mxu0 %v120
    %253 = vmatprep.subr.mxu0 0.0
    %254 = vmatpush1.msra.mxu0 %v121
    %255 = vmatprep.subr.mxu0 0.0
    %256 = vmatpush1.msra.mxu0 %v122
    %257 = vmatprep.subr.mxu0 0.0
    %258 = vmatpush1.msra.mxu0 %v123
    %259 = vmatprep.subr.mxu0 0.0
    %260 = vmatpush1.msra.mxu0 %v124
    %261 = vmatprep.subr.mxu0 0.0
    %262 = vmatpush1.msra.mxu0 %v125
    %263 = vmatprep.subr.mxu0 0.0
    %264 = vmatpush1.msra.mxu0 %v126
    %265 = vmatprep.subr.mxu0 0.0
    %266 = vmatpush1.msra.mxu0 %v127
    %267 = vmatprep.mubr.f32.mxu0 %v59
    %268 = vmatmul.mubr.f32.gmra.mrb[0].mxu0 %v58
    %v269 = vpop.f32.mrb[0].mxu0
    %v270 = vadd.f32 %v195, %v269
    %v271 = vpop.f32.mrb[0].mxu0
    %272 = vmatprep.mubr.f32.mxu0 %v63
    %273 = vmatmul.mubr.f32.gmra.mrb[0].mxu0 %v62
    %v274 = vpop.f32.mrb[0].mxu0
    %v275 = vadd.f32 %v200, %v274
    %v276 = vpop.f32.mrb[0].mxu0
    %277 = vdwg.mxu0
    %v278 = vmax.f32 %v270, 0.0
    %v279 = vmax.f32 %v275, 0.0
    %v280 = vld [vmem:[#allocation7] sm:$0xff]
    %v281 = vld [vmem:[#allocation7 + $0x8] sm:$0xff]
    %v282 = vld [vmem:[#allocation7 + $0x10] sm:$0xff]
    %v283 = vld [vmem:[#allocation7 + $0x18] sm:$0xff]
    %v284 = vld [vmem:[#allocation7 + $0x20] sm:$0xff]
    %v285 = vld [vmem:[#allocation7 + $0x28] sm:$0xff]
    %v286 = vld [vmem:[#allocation7 + $0x30] sm:$0xff]
    %v287 = vld [vmem:[#allocation7 + $0x38] sm:$0xff]
    %v288 = vld [vmem:[#allocation7 + $0x40] sm:$0xff]
    %v289 = vld [vmem:[#allocation7 + $0x48] sm:$0xff]
    %v290 = vld [vmem:[#allocation7 + $0x50] sm:$0xff]
    %v291 = vld [vmem:[#allocation7 + $0x58] sm:$0xff]
    %v292 = vld [vmem:[#allocation7 + $0x60] sm:$0xff]
    %v293 = vld [vmem:[#allocation7 + $0x68] sm:$0xff]
    %v294 = vld [vmem:[#allocation7 + $0x70] sm:$0xff]
    %v295 = vld [vmem:[#allocation7 + $0x78] sm:$0xff]
    %v296 = vld [vmem:[#allocation7 + $0x80] sm:$0xff]
    %v297 = vld [vmem:[#allocation7 + $0x88] sm:$0xff]
    %v298 = vld [vmem:[#allocation7 + $0x90] sm:$0xff]
    %v299 = vld [vmem:[#allocation7 + $0x98] sm:$0xff]
    %v300 = vld [vmem:[#allocation7 + $0xa0] sm:$0xff]
    %v301 = vld [vmem:[#allocation7 + $0xa8] sm:$0xff]
    %v302 = vld [vmem:[#allocation7 + $0xb0] sm:$0xff]
    %v303 = vld [vmem:[#allocation7 + $0xb8] sm:$0xff]
    %v304 = vld [vmem:[#allocation7 + $0xc0] sm:$0xff]
    %v305 = vld [vmem:[#allocation7 + $0xc8] sm:$0xff]
    %v306 = vld [vmem:[#allocation7 + $0xd0] sm:$0xff]
    %v307 = vld [vmem:[#allocation7 + $0xd8] sm:$0xff]
    %v308 = vld [vmem:[#allocation7 + $0xe0] sm:$0xff]
    %v309 = vld [vmem:[#allocation7 + $0xe8] sm:$0xff]
    %v310 = vld [vmem:[#allocation7 + $0xf0] sm:$0xff]
    %v311 = vld [vmem:[#allocation7 + $0xf8] sm:$0xff]
    %v312 = vld [vmem:[#allocation7 + $0x100] sm:$0xff]
    %v313 = vld [vmem:[#allocation7 + $0x108] sm:$0xff]
    %v314 = vld [vmem:[#allocation7 + $0x110] sm:$0xff]
    %v315 = vld [vmem:[#allocation7 + $0x118] sm:$0xff]
    %v316 = vld [vmem:[#allocation7 + $0x120] sm:$0xff]
    %v317 = vld [vmem:[#allocation7 + $0x128] sm:$0xff]
    %v318 = vld [vmem:[#allocation7 + $0x130] sm:$0xff]
    %v319 = vld [vmem:[#allocation7 + $0x138] sm:$0xff]
    %v320 = vld [vmem:[#allocation7 + $0x140] sm:$0xff]
    %v321 = vld [vmem:[#allocation7 + $0x148] sm:$0xff]
    %v322 = vld [vmem:[#allocation7 + $0x150] sm:$0xff]
    %v323 = vld [vmem:[#allocation7 + $0x158] sm:$0xff]
    %v324 = vld [vmem:[#allocation7 + $0x160] sm:$0xff]
    %v325 = vld [vmem:[#allocation7 + $0x168] sm:$0xff]
    %v326 = vld [vmem:[#allocation7 + $0x170] sm:$0xff]
    %v327 = vld [vmem:[#allocation7 + $0x178] sm:$0xff]
    %v328 = vld [vmem:[#allocation7 + $0x180] sm:$0xff]
    %v329 = vld [vmem:[#allocation7 + $0x188] sm:$0xff]
    %v330 = vld [vmem:[#allocation7 + $0x190] sm:$0xff]
    %v331 = vld [vmem:[#allocation7 + $0x198] sm:$0xff]
    %v332 = vld [vmem:[#allocation7 + $0x1a0] sm:$0xff]
    %v333 = vld [vmem:[#allocation7 + $0x1a8] sm:$0xff]
    %v334 = vld [vmem:[#allocation7 + $0x1b0] sm:$0xff]
    %v335 = vld [vmem:[#allocation7 + $0x1b8] sm:$0xff]
    %v336 = vld [vmem:[#allocation7 + $0x1c0] sm:$0xff]
    %v337 = vld [vmem:[#allocation7 + $0x1c8] sm:$0xff]
    %v338 = vld [vmem:[#allocation7 + $0x1d0] sm:$0xff]
    %v339 = vld [vmem:[#allocation7 + $0x1d8] sm:$0xff]
    %v340 = vld [vmem:[#allocation7 + $0x1e0] sm:$0xff]
    %v341 = vld [vmem:[#allocation7 + $0x1e8] sm:$0xff]
    %v342 = vld [vmem:[#allocation7 + $0x1f0] sm:$0xff]
    %v343 = vld [vmem:[#allocation7 + $0x1f8] sm:$0xff]
    %344 = vmatprep.subr.mxu0 %v281
    %345 = vmatpush1.msra.mxu0 %v280
    %346 = vmatprep.subr.mxu0 %v285
    %347 = vmatpush1.msra.mxu0 %v284
    %348 = vmatprep.subr.mxu0 %v289
    %349 = vmatpush1.msra.mxu0 %v288
    %350 = vmatprep.subr.mxu0 %v293
    %351 = vmatpush1.msra.mxu0 %v292
    %352 = vmatprep.subr.mxu0 %v297
    %353 = vmatpush1.msra.mxu0 %v296
    %354 = vmatprep.subr.mxu0 %v301
    %355 = vmatpush1.msra.mxu0 %v300
    %356 = vmatprep.subr.mxu0 %v305
    %357 = vmatpush1.msra.mxu0 %v304
    %358 = vmatprep.subr.mxu0 %v309
    %359 = vmatpush1.msra.mxu0 %v308
    %360 = vmatprep.subr.mxu0 %v313
    %361 = vmatpush1.msra.mxu0 %v312
    %362 = vmatprep.subr.mxu0 %v317
    %363 = vmatpush1.msra.mxu0 %v316
    %364 = vmatprep.subr.mxu0 %v321
    %365 = vmatpush1.msra.mxu0 %v320
    %366 = vmatprep.subr.mxu0 %v325
    %367 = vmatpush1.msra.mxu0 %v324
    %368 = vmatprep.subr.mxu0 %v329
    %369 = vmatpush1.msra.mxu0 %v328
    %370 = vmatprep.subr.mxu0 %v333
    %371 = vmatpush1.msra.mxu0 %v332
    %372 = vmatprep.subr.mxu0 %v337
    %373 = vmatpush1.msra.mxu0 %v336
    %374 = vmatprep.subr.mxu0 %v341
    %375 = vmatpush1.msra.mxu0 %v340
    %376 = vmatprep.subr.mxu0 0.0
    %377 = vmatpush1.msra.mxu0 0.0
    %378 = vmatprep.subr.mxu0 0.0
    %379 = vmatpush1.msra.mxu0 0.0
    %380 = vmatprep.subr.mxu0 0.0
    %381 = vmatpush1.msra.mxu0 0.0
    %382 = vmatprep.subr.mxu0 0.0
    %383 = vmatpush1.msra.mxu0 0.0
    %384 = vmatprep.subr.mxu0 0.0
    %385 = vmatpush1.msra.mxu0 0.0
    %386 = vmatprep.subr.mxu0 0.0
    %387 = vmatpush1.msra.mxu0 0.0
    %388 = vmatprep.subr.mxu0 0.0
    %389 = vmatpush1.msra.mxu0 0.0
    %390 = vmatprep.subr.mxu0 0.0
    %391 = vmatpush1.msra.mxu0 0.0
    %392 = vmatprep.subr.mxu0 0.0
    %393 = vmatpush1.msra.mxu0 0.0
    %394 = vmatprep.subr.mxu0 0.0
    %395 = vmatpush1.msra.mxu0 0.0
    %396 = vmatprep.subr.mxu0 0.0
    %397 = vmatpush1.msra.mxu0 0.0
    %398 = vmatprep.subr.mxu0 0.0
    %399 = vmatpush1.msra.mxu0 0.0
    %400 = vmatprep.subr.mxu0 0.0
    %401 = vmatpush1.msra.mxu0 0.0
    %402 = vmatprep.subr.mxu0 0.0
    %403 = vmatpush1.msra.mxu0 0.0
    %404 = vmatprep.subr.mxu0 0.0
    %405 = vmatpush1.msra.mxu0 0.0
    %406 = vmatprep.subr.mxu0 0.0
    %407 = vmatpush1.msra.mxu0 0.0
    %408 = vmatprep.mubr.f32.mxu0 0.0
    %409 = vmatmul.mubr.f32.gmra.mrb[0].mxu0 %v278
    %v410 = vpop.f32.mrb[0].mxu0
    %v411 = vadd.f32 0.0, %v410
    %v412 = vpop.f32.mrb[0].mxu0
    %v413 = vadd.f32 0.0, %v412
    %414 = vmatprep.mubr.f32.mxu0 0.0
    %415 = vmatmul.mubr.f32.gmra.mrb[0].mxu0 %v279
    %v416 = vpop.f32.mrb[0].mxu0
    %v417 = vadd.f32 0.0, %v416
    %v418 = vpop.f32.mrb[0].mxu0
    %v419 = vadd.f32 0.0, %v418
    %420 = vdwg.mxu0
    %421 = vmatprep.subr.mxu0 %v283
    %422 = vmatpush1.msra.mxu0 %v282
    %423 = vmatprep.subr.mxu0 %v287
    %424 = vmatpush1.msra.mxu0 %v286
    %425 = vmatprep.subr.mxu0 %v291
    %426 = vmatpush1.msra.mxu0 %v290
    %427 = vmatprep.subr.mxu0 %v295
    %428 = vmatpush1.msra.mxu0 %v294
    %429 = vmatprep.subr.mxu0 %v299
    %430 = vmatpush1.msra.mxu0 %v298
    %431 = vmatprep.subr.mxu0 %v303
    %432 = vmatpush1.msra.mxu0 %v302
    %433 = vmatprep.subr.mxu0 %v307
    %434 = vmatpush1.msra.mxu0 %v306
    %435 = vmatprep.subr.mxu0 %v311
    %436 = vmatpush1.msra.mxu0 %v310
    %437 = vmatprep.subr.mxu0 %v315
    %438 = vmatpush1.msra.mxu0 %v314
    %439 = vmatprep.subr.mxu0 %v319
    %440 = vmatpush1.msra.mxu0 %v318
    %441 = vmatprep.subr.mxu0 %v323
    %442 = vmatpush1.msra.mxu0 %v322
    %443 = vmatprep.subr.mxu0 %v327
    %444 = vmatpush1.msra.mxu0 %v326
    %445 = vmatprep.subr.mxu0 %v331
    %446 = vmatpush1.msra.mxu0 %v330
    %447 = vmatprep.subr.mxu0 %v335
    %448 = vmatpush1.msra.mxu0 %v334
    %449 = vmatprep.subr.mxu0 %v339
    %450 = vmatpush1.msra.mxu0 %v338
    %451 = vmatprep.subr.mxu0 %v343
    %452 = vmatpush1.msra.mxu0 %v342
    %453 = vmatprep.subr.mxu0 0.0
    %454 = vmatpush1.msra.mxu0 0.0
    %455 = vmatprep.subr.mxu0 0.0
    %456 = vmatpush1.msra.mxu0 0.0
    %457 = vmatprep.subr.mxu0 0.0
    %458 = vmatpush1.msra.mxu0 0.0
    %459 = vmatprep.subr.mxu0 0.0
    %460 = vmatpush1.msra.mxu0 0.0
    %461 = vmatprep.subr.mxu0 0.0
    %462 = vmatpush1.msra.mxu0 0.0
    %463 = vmatprep.subr.mxu0 0.0
    %464 = vmatpush1.msra.mxu0 0.0
    %465 = vmatprep.subr.mxu0 0.0
    %466 = vmatpush1.msra.mxu0 0.0
    %467 = vmatprep.subr.mxu0 0.0
    %468 = vmatpush1.msra.mxu0 0.0
    %469 = vmatprep.subr.mxu0 0.0
    %470 = vmatpush1.msra.mxu0 0.0
    %471 = vmatprep.subr.mxu0 0.0
    %472 = vmatpush1.msra.mxu0 0.0
    %473 = vmatprep.subr.mxu0 0.0
    %474 = vmatpush1.msra.mxu0 0.0
    %475 = vmatprep.subr.mxu0 0.0
    %476 = vmatpush1.msra.mxu0 0.0
    %477 = vmatprep.subr.mxu0 0.0
    %478 = vmatpush1.msra.mxu0 0.0
    %479 = vmatprep.subr.mxu0 0.0
    %480 = vmatpush1.msra.mxu0 0.0
    %481 = vmatprep.subr.mxu0 0.0
    %482 = vmatpush1.msra.mxu0 0.0
    %483 = vmatprep.subr.mxu0 0.0
    %484 = vmatpush1.msra.mxu0 0.0
    %485 = vmatprep.mubr.f32.mxu0 0.0
    %486 = vmatmul.mubr.f32.gmra.mrb[0].mxu0 %v278
    %v487 = vpop.f32.mrb[0].mxu0
    %v488 = vadd.f32 0.0, %v487
    %v489 = vpop.f32.mrb[0].mxu0
    %v490 = vadd.f32 0.0, %v489
    %491 = vmatprep.mubr.f32.mxu0 0.0
    %492 = vmatmul.mubr.f32.gmra.mrb[0].mxu0 %v279
    %v493 = vpop.f32.mrb[0].mxu0
    %v494 = vadd.f32 0.0, %v493
    %v495 = vpop.f32.mrb[0].mxu0
    %v496 = vadd.f32 0.0, %v495
    %497 = vdwg.mxu0
    %v498 = vmax.f32 %v411, 0.0
    %v499 = vmax.f32 %v413, 0.0
    %v500 = vmax.f32 %v488, 0.0
    %v501 = vmax.f32 %v490, 0.0
    %v502 = vmax.f32 %v417, 0.0
    %v503 = vmax.f32 %v419, 0.0
    %v504 = vmax.f32 %v494, 0.0
    %v505 = vmax.f32 %v496, 0.0
    %506 = vst [vmem:[#allocation8] sm:$0xff] %v498
    %507 = vst [vmem:[#allocation8 + $0x8] sm:$0xff] %v499
    %508 = vst [vmem:[#allocation8 + $0x10] sm:$0xff] %v500
    %509 = vst [vmem:[#allocation8 + $0x18] sm:$0xff] %v501
    %510 = vst [vmem:[#allocation8 + $0x20] sm:$0xff] %v502
    %511 = vst [vmem:[#allocation8 + $0x28] sm:$0xff] %v503
    %512 = vst [vmem:[#allocation8 + $0x30] sm:$0xff] %v504
    %513 = vst [vmem:[#allocation8 + $0x38] sm:$0xff] %v505
    // Predicated region
    $region26: #{adapter_forward.1} parent=1 // pred_check
      _
    $region27: #{adapter_forward.1} parent=1 // pred_check_branch
      %515 = sbr.rel (0) target = $region29
    $region28: #{adapter_forward.1} parent=1 // pred_region
      %s517 = ssub.s32 1024, 1024
      %518 = vsyncadd [#allocation4], %s517
      %s519 = sshll.u32 [#allocation8], 4
      %s520 = int_to_ptr.vmem [resolvable:$true] %s519
      %525 = dma.vmem_to_hbm [thread:$0]  %s520, 1024, %s3, [#allocation4], 512, 512, 32
    $region29: #{adapter_forward.1} parent=1 // pred_fallthru
      _
    // Predicated region
    $region30: #{adapter_forward.1} parent=1 // pred_check
      _
    $region31: #{adapter_forward.1} parent=1 // pred_check_branch
      %527 = sbr.rel (0) target = $region33
    $region32: #{adapter_forward.1} parent=1 // pred_region
      %528 = dma.done [#allocation4], 1024
    $region33: #{adapter_forward.1} parent=1 // pred_fallthru
      _
    %529 = vsyncpa [#allocation3], 1
    %530 = vsyncpa [#allocation6], 1
    %531 = vsyncpa [#allocation4], 1

</llo_original>
